<compile_context>
chip_gen: v7x
topology: tpu7x:2x2x1
jax: 0.10.0
libtpu: 0.0.40
codegen_flags: <defaults>
</compile_context>

<pallas_src>
import numpy as np
import jax
import jax.numpy as jnp
from jax.experimental import pallas as pl
from jax.experimental.pallas import tpu as pltpu

LANES = 128                     # boxes per lane row
TARGET_ROWS_PER_BLOCK = 512     # 512 rows * 128 lanes = 65536 boxes per grid step


def _round_up(x, m):
    return ((x + m - 1) // m) * m


def _num_tensorcores_per_chip():
    """Best-effort guess: v5e / v6e expose 1 TensorCore per JAX device, v7x exposes 2."""
    try:
        kind = jax.devices()[0].device_kind.lower()
    except Exception:
        return 1
    if "v5" in kind or "v6" in kind:
        return 1
    return 2


_NUM_TC = _num_tensorcores_per_chip()


def _probiou_kernel(pred_ref, tgt_ref, out_ref):
    # pred_ref: (5, TR, 128) = (x, y, a, b, c);  tgt_ref: (5, TR, 128) = (x, y, w, h, r).
    # out_ref:  (TR, 128) per-element loss. Every parameter is a full (TR,128) vreg-dense tile.
    xp = pred_ref[0]
    yp = pred_ref[1]
    ap = pred_ref[2]            # Sigma_p[0,0]
    bp = pred_ref[3]            # Sigma_p[1,1]
    cp = pred_ref[4]            # Sigma_p[0,1]

    xt = tgt_ref[0]
    yt = tgt_ref[1]
    w = jnp.clip(tgt_ref[2], 1e-7, 1e7)
    h = jnp.clip(tgt_ref[3], 1e-7, 1e7)
    r = tgt_ref[4]

    # Sigma_t = R @ diag((w/2)^2, (h/2)^2) @ R^T, double-angle form:
    #   at = m + d*cos(2r), bt = m - d*cos(2r), ct = d*sin(2r)
    two_r = r + r
    cos2r = jnp.cos(two_r)
    sin2r = jnp.sin(two_r)
    w2 = 0.25 * w * w
    h2 = 0.25 * h * h
    m = 0.5 * (w2 + h2)
    d = 0.5 * (w2 - h2)
    at = m + d * cos2r
    bt = m - d * cos2r
    ct = d * sin2r

    det_p = ap * bp - cp * cp
    det_t = at * bt - ct * ct

    a = 0.5 * (ap + at)
    b = 0.5 * (bp + bt)
    c = 0.5 * (cp + ct)
    det = a * b - c * c

    x = xp - xt
    y = yp - yt

    b1 = 0.125 * (a * y * y + b * x * x - 2.0 * c * x * y) / det
    # 0.5*log(det/sqrt(det_p*det_t + eps)) == 0.5*log(det) - 0.25*log(det_p*det_t + eps)
    b2 = 0.5 * jnp.log(det) - 0.25 * jnp.log(det_p * det_t + 1e-7)
    bc = jnp.exp(-(b1 + b2))
    out_ref[...] = jnp.sqrt(1.0 - jnp.minimum(bc, 1.0))


def _probiou_pallas_impl(pred_xyabc, target_xywhr):
    """Per-element ProbIoU loss for ALL boxes. pred/target: (N,5). Returns (N,) f32."""
    n = pred_xyabc.shape[0]
    rows = _round_up(pl.cdiv(n, LANES), 8)

    if _NUM_TC >= 2 and rows >= 16:
        # Multi-TensorCore (v7x): keep the block count >= 2 and even so both TCs get equal work.
        num_blocks = 2 * max(1, pl.cdiv(rows, 2 * TARGET_ROWS_PER_BLOCK))
    else:
        # Single TensorCore (v5e/v6e): one block when the work fits; no extra grid-step overhead.
        num_blocks = max(1, pl.cdiv(rows, TARGET_ROWS_PER_BLOCK))

    tr = _round_up(pl.cdiv(rows, num_blocks), 8)
    rows = tr * num_blocks
    n_pad = rows * LANES

    def prep(x):
        # (N,5) -> lane-dense (5, rows, 128); zero padding is benign (padded lanes are sliced off).
        xt = jnp.asarray(x, jnp.float32).T          # (5, N)
        xt = jnp.pad(xt, ((0, 0), (0, n_pad - n)))  # (5, n_pad)
        return xt.reshape(5, rows, LANES)

    pred_slab = prep(pred_xyabc)
    tgt_slab = prep(target_xywhr)

    out = pl.pallas_call(
        _probiou_kernel,
        out_shape=jax.ShapeDtypeStruct((rows, LANES), jnp.float32),
        grid_spec=pl.GridSpec(
            grid=(num_blocks,),
            in_specs=[
                pl.BlockSpec((5, tr, LANES), lambda i: (0, i, 0)),
                pl.BlockSpec((5, tr, LANES), lambda i: (0, i, 0)),
            ],
            out_specs=pl.BlockSpec((tr, LANES), lambda i: (i, 0)),
        ),
        compiler_params=pltpu.CompilerParams(
            dimension_semantics=("parallel",),
            vmem_limit_bytes=32 * 1024 * 1024,
        ),
    )(pred_slab, tgt_slab)
    return out.reshape(-1)[:n]


@jax.jit
def _probiou_full_jit(pred, target, loss_weight):
    """Fully fused hot path: prep + pallas kernel + loss_weight scaling, one XLA program."""
    return _probiou_pallas_impl(pred, target) * loss_weight


def probiou_pallas(pred_xyabc, target_xywhr):
    return _probiou_full_jit(jnp.asarray(pred_xyabc, jnp.float32),
                             jnp.asarray(target_xywhr, jnp.float32),
                             jnp.float32(1.0))


def gdloss_gaucho_forward(pred, target, weight=None, loss_weight=1.0):
    """GDLoss_GauCho.forward with loss_type='probiou', gaussian_prediction=True, no reduction override.

    pred, target: (N,5); weight: (N,) or (N,5) or None. Returns per-element loss of shape (M,),
    M = sum(weight>0), matching the PyTorch forward (which applies no reduction to the probiou loss).
    """
    pred = jnp.asarray(pred, jnp.float32)
    target = jnp.asarray(target, jnp.float32)
    lw = jnp.float32(loss_weight)

    if weight is None:
        return _probiou_full_jit(pred, target, lw)

    # Evaluate the mask once on host (the module's (M,) output is inherently dynamic-shape);
    # the kernel itself always runs at the fixed padded (N,) shape -> no per-M recompiles.
    weight_np = np.asarray(jax.device_get(weight), np.float32)
    if not (weight_np > 0).any():
        # original early-exit branch (reduction != 'none'): (pred * weight).sum()
        w = jnp.asarray(weight_np)
        w = w[:, None] if w.ndim == 1 else w
        return (pred * w).sum()
    if weight_np.ndim > 1:
        weight_np = weight_np.mean(-1)
    mask = weight_np > 0

    loss_full = _probiou_full_jit(pred, target, lw)
    # TODO(synk): the masked selection below is inherently dynamic-shape (mirrors PyTorch `pred[mask]`);
    # it runs as a single gather outside the kernel with a host-resident index set.
    return loss_full[np.flatnonzero(mask)]


def _reference(pred, target):
    """Pure-jnp reference of the original torch formula for validation."""
    xp, yp, ap, bp, cp = [pred[:, i] for i in range(5)]
    xt, yt = target[:, 0], target[:, 1]
    w = jnp.clip(target[:, 2], 1e-7, 1e7)
    h = jnp.clip(target[:, 3], 1e-7, 1e7)
    r = target[:, 4]
    cos_r, sin_r = jnp.cos(r), jnp.sin(r)
    w2, h2 = 0.25 * w * w, 0.25 * h * h
    at = w2 * cos_r**2 + h2 * sin_r**2
    bt = w2 * sin_r**2 + h2 * cos_r**2
    ct = (w2 - h2) * cos_r * sin_r
    det_p = ap * bp - cp**2
    det_t = at * bt - ct**2
    a, b, c = 0.5 * (ap + at), 0.5 * (bp + bt), 0.5 * (cp + ct)
    det = a * b - c**2
    x, y = xp - xt, yp - yt
    b1 = 0.125 * (a * y**2 + b * x**2 - 2 * c * x * y) / det
    b2 = 0.5 * jnp.log(det / jnp.sqrt(det_p * det_t + 1e-7))
    bc = jnp.exp(-(b1 + b2))
    return jnp.sqrt(1.0 - jnp.minimum(bc, 1.0))


if __name__ == "__main__":
    key = jax.random.PRNGKey(0)
    k1, k2, k3, k4, k5, k6 = jax.random.split(key, 6)

    N = 200
    # pred in gaussian form (x, y, a, b, c): a,b positive-definite-ish, small c
    xy_p = jax.random.normal(k1, (N, 2)) * 4.0
    ab_p = 1.0 + jax.random.uniform(k2, (N, 2)) * 4.0
    c_p = (jax.random.uniform(k3, (N, 1)) - 0.5) * 0.5
    pred = jnp.concatenate([xy_p, ab_p, c_p], axis=-1)

    # target in (x, y, w, h, r) form
    xy_t = xy_p + jax.random.normal(k4, (N, 2)) * 0.5
    wh_t = 1.0 + jax.random.uniform(k5, (N, 2)) * 5.0
    r_t = (jax.random.uniform(k6, (N, 1)) - 0.5) * jnp.pi
    target = jnp.concatenate([xy_t, wh_t, r_t], axis=-1)

    # weight with some zeros -> data-dependent mask (applied to the kernel output, not on host inputs)
    weight = np.ones((N,), np.float32)
    weight[::7] = 0.0

    loss = gdloss_gaucho_forward(pred, target, weight, loss_weight=1.0)
    loss = jax.block_until_ready(loss)

    # validate against pure-jnp reference on the masked set
    mask = weight > 0
    ref = _reference(jnp.asarray(np.asarray(pred)[mask]),
                     jnp.asarray(np.asarray(target)[mask]))
    assert loss.shape == (int(mask.sum()),)
    np.testing.assert_allclose(np.asarray(loss), np.asarray(ref), rtol=1e-5, atol=1e-5)

    print("KERNEL_OK")
</pallas_src>

<mosaic_0001>
module attributes {stable_mosaic.version = 11 : i64} {
  func.func @_probiou_kernel(%arg0: i32, %arg1: memref<5x8x128xf32, #tpu.memory_space<vmem>>, %arg2: memref<5x8x128xf32, #tpu.memory_space<vmem>>, %arg3: memref<8x128xf32, #tpu.memory_space<vmem>>) attributes {dimension_semantics = [#tpu.dimension_semantics<parallel>], iteration_bounds = array<i64: 1>, scalar_prefetch = 0 : i64, scratch_operands = 0 : i64, tpu.core_type = #tpu.core_type<tc>, window_params = [{transform_indices = @transform_0, window_bounds = array<i64: 5, 8, 128>}, {transform_indices = @transform_1, window_bounds = array<i64: 5, 8, 128>}, {transform_indices = @transform_2, window_bounds = array<i64: 8, 128>}]} {
    %c0 = arith.constant 0 : index
    %c0_0 = arith.constant 0 : index
    %c0_1 = arith.constant 0 : index
    %0 = vector.load %arg1[%c0, %c0_0, %c0_1] : memref<5x8x128xf32, #tpu.memory_space<vmem>>, vector<1x8x128xf32>
    %1 = vector.shape_cast %0 : vector<1x8x128xf32> to vector<8x128xf32>
    %c1 = arith.constant 1 : index
    %c0_2 = arith.constant 0 : index
    %c0_3 = arith.constant 0 : index
    %2 = vector.load %arg1[%c1, %c0_2, %c0_3] : memref<5x8x128xf32, #tpu.memory_space<vmem>>, vector<1x8x128xf32>
    %3 = vector.shape_cast %2 : vector<1x8x128xf32> to vector<8x128xf32>
    %c2 = arith.constant 2 : index
    %c0_4 = arith.constant 0 : index
    %c0_5 = arith.constant 0 : index
    %4 = vector.load %arg1[%c2, %c0_4, %c0_5] : memref<5x8x128xf32, #tpu.memory_space<vmem>>, vector<1x8x128xf32>
    %5 = vector.shape_cast %4 : vector<1x8x128xf32> to vector<8x128xf32>
    %c3 = arith.constant 3 : index
    %c0_6 = arith.constant 0 : index
    %c0_7 = arith.constant 0 : index
    %6 = vector.load %arg1[%c3, %c0_6, %c0_7] : memref<5x8x128xf32, #tpu.memory_space<vmem>>, vector<1x8x128xf32>
    %7 = vector.shape_cast %6 : vector<1x8x128xf32> to vector<8x128xf32>
    %c4 = arith.constant 4 : index
    %c0_8 = arith.constant 0 : index
    %c0_9 = arith.constant 0 : index
    %8 = vector.load %arg1[%c4, %c0_8, %c0_9] : memref<5x8x128xf32, #tpu.memory_space<vmem>>, vector<1x8x128xf32>
    %9 = vector.shape_cast %8 : vector<1x8x128xf32> to vector<8x128xf32>
    %c0_10 = arith.constant 0 : index
    %c0_11 = arith.constant 0 : index
    %c0_12 = arith.constant 0 : index
    %10 = vector.load %arg2[%c0_10, %c0_11, %c0_12] : memref<5x8x128xf32, #tpu.memory_space<vmem>>, vector<1x8x128xf32>
    %11 = vector.shape_cast %10 : vector<1x8x128xf32> to vector<8x128xf32>
    %c1_13 = arith.constant 1 : index
    %c0_14 = arith.constant 0 : index
    %c0_15 = arith.constant 0 : index
    %12 = vector.load %arg2[%c1_13, %c0_14, %c0_15] : memref<5x8x128xf32, #tpu.memory_space<vmem>>, vector<1x8x128xf32>
    %13 = vector.shape_cast %12 : vector<1x8x128xf32> to vector<8x128xf32>
    %c2_16 = arith.constant 2 : index
    %c0_17 = arith.constant 0 : index
    %c0_18 = arith.constant 0 : index
    %14 = vector.load %arg2[%c2_16, %c0_17, %c0_18] : memref<5x8x128xf32, #tpu.memory_space<vmem>>, vector<1x8x128xf32>
    %15 = vector.shape_cast %14 : vector<1x8x128xf32> to vector<8x128xf32>
    %cst = arith.constant 1.000000e-07 : f32
    %cst_19 = arith.constant 1.000000e+07 : f32
    %16 = vector.broadcast %cst : f32 to vector<8x128xf32>
    %17 = arith.maximumf %16, %15 : vector<8x128xf32>
    %18 = vector.broadcast %cst_19 : f32 to vector<8x128xf32>
    %19 = arith.minimumf %18, %17 : vector<8x128xf32>
    %c3_20 = arith.constant 3 : index
    %c0_21 = arith.constant 0 : index
    %c0_22 = arith.constant 0 : index
    %20 = vector.load %arg2[%c3_20, %c0_21, %c0_22] : memref<5x8x128xf32, #tpu.memory_space<vmem>>, vector<1x8x128xf32>
    %21 = vector.shape_cast %20 : vector<1x8x128xf32> to vector<8x128xf32>
    %cst_23 = arith.constant 1.000000e-07 : f32
    %cst_24 = arith.constant 1.000000e+07 : f32
    %22 = vector.broadcast %cst_23 : f32 to vector<8x128xf32>
    %23 = arith.maximumf %22, %21 : vector<8x128xf32>
    %24 = vector.broadcast %cst_24 : f32 to vector<8x128xf32>
    %25 = arith.minimumf %24, %23 : vector<8x128xf32>
    %c4_25 = arith.constant 4 : index
    %c0_26 = arith.constant 0 : index
    %c0_27 = arith.constant 0 : index
    %26 = vector.load %arg2[%c4_25, %c0_26, %c0_27] : memref<5x8x128xf32, #tpu.memory_space<vmem>>, vector<1x8x128xf32>
    %27 = vector.shape_cast %26 : vector<1x8x128xf32> to vector<8x128xf32>
    %28 = arith.addf %27, %27 : vector<8x128xf32>
    %29 = math.cos %28 : vector<8x128xf32>
    %30 = math.sin %28 : vector<8x128xf32>
    %cst_28 = arith.constant 2.500000e-01 : f32
    %31 = vector.broadcast %cst_28 : f32 to vector<8x128xf32>
    %32 = arith.mulf %31, %19 : vector<8x128xf32>
    %33 = arith.mulf %32, %19 : vector<8x128xf32>
    %cst_29 = arith.constant 2.500000e-01 : f32
    %34 = vector.broadcast %cst_29 : f32 to vector<8x128xf32>
    %35 = arith.mulf %34, %25 : vector<8x128xf32>
    %36 = arith.mulf %35, %25 : vector<8x128xf32>
    %37 = arith.addf %33, %36 : vector<8x128xf32>
    %cst_30 = arith.constant 5.000000e-01 : f32
    %38 = vector.broadcast %cst_30 : f32 to vector<8x128xf32>
    %39 = arith.mulf %38, %37 : vector<8x128xf32>
    %40 = arith.subf %33, %36 : vector<8x128xf32>
    %cst_31 = arith.constant 5.000000e-01 : f32
    %41 = vector.broadcast %cst_31 : f32 to vector<8x128xf32>
    %42 = arith.mulf %41, %40 : vector<8x128xf32>
    %43 = arith.mulf %42, %29 : vector<8x128xf32>
    %44 = arith.addf %39, %43 : vector<8x128xf32>
    %45 = arith.mulf %42, %29 : vector<8x128xf32>
    %46 = arith.subf %39, %45 : vector<8x128xf32>
    %47 = arith.mulf %42, %30 : vector<8x128xf32>
    %48 = arith.mulf %5, %7 : vector<8x128xf32>
    %49 = arith.mulf %9, %9 : vector<8x128xf32>
    %50 = arith.subf %48, %49 : vector<8x128xf32>
    %51 = arith.mulf %44, %46 : vector<8x128xf32>
    %52 = arith.mulf %47, %47 : vector<8x128xf32>
    %53 = arith.subf %51, %52 : vector<8x128xf32>
    %54 = arith.addf %5, %44 : vector<8x128xf32>
    %cst_32 = arith.constant 5.000000e-01 : f32
    %55 = vector.broadcast %cst_32 : f32 to vector<8x128xf32>
    %56 = arith.mulf %55, %54 : vector<8x128xf32>
    %57 = arith.addf %7, %46 : vector<8x128xf32>
    %cst_33 = arith.constant 5.000000e-01 : f32
    %58 = vector.broadcast %cst_33 : f32 to vector<8x128xf32>
    %59 = arith.mulf %58, %57 : vector<8x128xf32>
    %60 = arith.addf %9, %47 : vector<8x128xf32>
    %cst_34 = arith.constant 5.000000e-01 : f32
    %61 = vector.broadcast %cst_34 : f32 to vector<8x128xf32>
    %62 = arith.mulf %61, %60 : vector<8x128xf32>
    %63 = arith.mulf %56, %59 : vector<8x128xf32>
    %64 = arith.mulf %62, %62 : vector<8x128xf32>
    %65 = arith.subf %63, %64 : vector<8x128xf32>
    %66 = arith.subf %1, %11 : vector<8x128xf32>
    %67 = arith.subf %3, %13 : vector<8x128xf32>
    %68 = arith.mulf %56, %67 : vector<8x128xf32>
    %69 = arith.mulf %68, %67 : vector<8x128xf32>
    %70 = arith.mulf %59, %66 : vector<8x128xf32>
    %71 = arith.mulf %70, %66 : vector<8x128xf32>
    %72 = arith.addf %69, %71 : vector<8x128xf32>
    %cst_35 = arith.constant 2.000000e+00 : f32
    %73 = vector.broadcast %cst_35 : f32 to vector<8x128xf32>
    %74 = arith.mulf %73, %62 : vector<8x128xf32>
    %75 = arith.mulf %74, %66 : vector<8x128xf32>
    %76 = arith.mulf %75, %67 : vector<8x128xf32>
    %77 = arith.subf %72, %76 : vector<8x128xf32>
    %cst_36 = arith.constant 1.250000e-01 : f32
    %78 = vector.broadcast %cst_36 : f32 to vector<8x128xf32>
    %79 = arith.mulf %78, %77 : vector<8x128xf32>
    %80 = arith.divf %79, %65 : vector<8x128xf32>
    %81 = math.log %65 : vector<8x128xf32>
    %cst_37 = arith.constant 5.000000e-01 : f32
    %82 = vector.broadcast %cst_37 : f32 to vector<8x128xf32>
    %83 = arith.mulf %82, %81 : vector<8x128xf32>
    %84 = arith.mulf %50, %53 : vector<8x128xf32>
    %cst_38 = arith.constant 1.000000e-07 : f32
    %85 = vector.broadcast %cst_38 : f32 to vector<8x128xf32>
    %86 = arith.addf %84, %85 : vector<8x128xf32>
    %87 = math.log %86 : vector<8x128xf32>
    %cst_39 = arith.constant 2.500000e-01 : f32
    %88 = vector.broadcast %cst_39 : f32 to vector<8x128xf32>
    %89 = arith.mulf %88, %87 : vector<8x128xf32>
    %90 = arith.subf %83, %89 : vector<8x128xf32>
    %91 = arith.addf %80, %90 : vector<8x128xf32>
    %cst_40 = arith.constant 0.000000e+00 : f32
    %92 = vector.broadcast %cst_40 : f32 to vector<8x128xf32>
    %93 = arith.subf %92, %91 : vector<8x128xf32>
    %94 = math.exp %93 : vector<8x128xf32>
    %cst_41 = arith.constant 1.000000e+00 : f32
    %95 = vector.broadcast %cst_41 : f32 to vector<8x128xf32>
    %96 = arith.minimumf %94, %95 : vector<8x128xf32>
    %cst_42 = arith.constant 1.000000e+00 : f32
    %97 = vector.broadcast %cst_42 : f32 to vector<8x128xf32>
    %98 = arith.subf %97, %96 : vector<8x128xf32>
    %99 = math.sqrt %98 : vector<8x128xf32>
    %c0_43 = arith.constant 0 : index
    %c0_44 = arith.constant 0 : index
    %100 = vector.load %arg3[%c0_43, %c0_44] : memref<8x128xf32, #tpu.memory_space<vmem>>, vector<8x128xf32>
    tpu.vector_store %arg3[%c0_43, %c0_44], %99 {strides = array<i32>} : memref<8x128xf32, #tpu.memory_space<vmem>>, vector<8x128xf32>,
    return
  }
  func.func @transform_0(%arg0: i32) -> (i32, i32, i32) {
    %c0_i32 = arith.constant 0 : i32
    %c0_i32_0 = arith.constant 0 : i32
    %c0_i32_1 = arith.constant 0 : i32
    return %c0_i32, %arg0, %c0_i32_0 : i32, i32, i32
  }
  func.func @transform_1(%arg0: i32) -> (i32, i32, i32) {
    %c0_i32 = arith.constant 0 : i32
    %c0_i32_0 = arith.constant 0 : i32
    %c0_i32_1 = arith.constant 0 : i32
    return %c0_i32, %arg0, %c0_i32_0 : i32, i32, i32
  }
  func.func @transform_2(%arg0: i32) -> (i32, i32) {
    %c0_i32 = arith.constant 0 : i32
    %c0_i32_0 = arith.constant 0 : i32
    return %arg0, %c0_i32 : i32, i32
  }
}

</mosaic_0001>

<llo_original>
// kernel: _probiou_full_jit.1
$region0: #{_probiou_full_jit.1}
  #allocation0 [shape = 'u32[]', space=smem, size = 0x4, offset = 0x4, fixed_abs, tag = 'smem constant byte address 0x4 - core index']
  #allocation1 [shape = 'u32[144,128]{1,0:T(1,128)}', space=vmem, size = 0x12000, scoped, tag = 'internal scratch']
  %s0 = inlined_call_operand.vmem [shape: f32[5,8,128], index: 0, kind: input, shape index: {}]
  %s1 = inlined_call_operand.vmem [shape: f32[5,8,128], index: 1, kind: input, shape index: {}]
  %s2 = inlined_call_operand.vmem [shape: f32[8,128], index: 2, kind: output, shape index: {}]
  %s3 = sld [smem:[#allocation0]]
  $region18: #{_probiou_full_jit.1} parent=0
    _
  %s5 = ssub.s32 1, %s3
  %s6 = scalar_select 0, %s5, %s3
  // Predicated region
  $region2: #{_probiou_full_jit.1} parent=0 // pred_check
    _
  $region3: #{_probiou_full_jit.1} parent=0 // pred_check_branch
    %8 = sbr.rel (0) target = $region5
  $region4: #{_probiou_full_jit.1} parent=0 // pred_region
    _
  $region5: #{_probiou_full_jit.1} parent=0 // pred_fallthru
    _
  // Predicated region
  $region6: #{_probiou_full_jit.1} parent=0 // pred_check
    _
  $region7: #{_probiou_full_jit.1} parent=0 // pred_check_branch
    %10 = sbr.rel (0) target = $region9
  $region8: #{_probiou_full_jit.1} parent=0 // pred_region
    _
  $region9: #{_probiou_full_jit.1} parent=0 // pred_fallthru
    _
  %v11 = vld [vmem:[%s0] sm:$0xff]
  %s12 = scalar_lea.vmem %s0, 8
  %v13 = vld [vmem:[%s12] sm:$0xff]
  %s14 = scalar_lea.vmem %s0, 16
  %v15 = vld [vmem:[%s14] sm:$0xff]
  %s16 = scalar_lea.vmem %s0, 24
  %v17 = vld [vmem:[%s16] sm:$0xff]
  %s18 = scalar_lea.vmem %s0, 32
  %v19 = vld [vmem:[%s18] sm:$0xff]
  %v20 = vld [vmem:[%s1] sm:$0xff]
  %s21 = scalar_lea.vmem %s1, 8
  %v22 = vld [vmem:[%s21] sm:$0xff]
  %s23 = scalar_lea.vmem %s1, 16
  %v24 = vld [vmem:[%s23] sm:$0xff]
  %v25 = vmax.f32 %v24, 1e-07
  %v26 = vmin.f32 %v25, 10000000.0
  %s27 = scalar_lea.vmem %s1, 24
  %v28 = vld [vmem:[%s27] sm:$0xff]
  %v29 = vmax.f32 %v28, 1e-07
  %v30 = vmin.f32 %v29, 10000000.0
  %s31 = scalar_lea.vmem %s1, 32
  %v32 = vld [vmem:[%s31] sm:$0xff]
  %v33 = vadd.f32 %v32, %v32
  %v34 = vand.u32 2147483647, %v33
  %vm35 = vcmp.le.f32.partialorder %v34, 0.7853982
  %vm36 = vcmp.lt.s32.totalorder %v33, 0
  %v37 = vand.u32 %v33, 2139095040
  %v38 = vshrl.u32 %v37, 23
  %v39 = vsub.s32 %v38, 127
  %v40 = vand.u32 2147483647, %v33
  %v41 = vand.u32 %v40, 8388607
  %v42 = vor.u32 %v41, 8388608
  %v43 = vsub.s32 0, %v42
  %v44 = vadd.s32 %v39, 1
  %vm45 = vcmp.gt.s32.totalorder %v44, 0
  %v46 = vsel %vm45, %v44, 0
  %v47 = vshrl.u32 %v46, 5
  %v48 = vand.u32 %v46, 31
  %v49 = vsub.s32 32, %v48
  %v50 = vshrl.u32 683565275, %v49
  %v51 = vshll.u32 683565275, %v48
  %v52 = vshrl.u32 2475754826, %v49
  %v53 = vor.u32 %v51, %v52
  %v54 = vshll.u32 2475754826, %v48
  %v55 = vshrl.u32 2131351028, %v49
  %v56 = vor.u32 %v54, %v55
  %v57 = vshll.u32 2131351028, %v48
  %v58 = vshrl.u32 2102212464, %v49
  %v59 = vor.u32 %v57, %v58
  %v60 = vshll.u32 2102212464, %v48
  %v61 = vshrl.u32 920167782, %v49
  %v62 = vor.u32 %v60, %v61
  %v63 = vshll.u32 920167782, %v48
  %v64 = vshrl.u32 1326507024, %v49
  %v65 = vor.u32 %v63, %v64
  %vm66 = vcmp.lt.s32.totalorder %v47, 1
  %vm67 = vcmp.lt.s32.totalorder %v47, 2
  %vm68 = vcmp.lt.s32.totalorder %v47, 3
  %vm69 = vcmp.lt.s32.totalorder %v47, 4
  %v70 = vsel %vm66, %v50, %v53
  %v71 = vsel %vm69, %v59, 2102212464
  %v72 = vsel %vm68, %v56, %v71
  %v73 = vsel %vm67, %v70, %v72
  %v74 = vsel %vm66, %v53, %v56
  %v75 = vsel %vm69, %v62, 920167782
  %v76 = vsel %vm68, %v59, %v75
  %v77 = vsel %vm67, %v74, %v76
  %v78 = vsel %vm66, %v56, %v59
  %v79 = vsel %vm69, %v65, 1326507024
  %v80 = vsel %vm68, %v62, %v79
  %v81 = vsel %vm67, %v78, %v80
  %v82 = vshll.u32 %v42, 8
  %v83 = vmul.u32.u64.compose %v82, %v81
  %v84 = vextract.low.u32 %v83
  %v85 = vextract.high.u32 %v83
  %v86 = vmul.u32.u64.compose %v82, %v77
  %v87 = vextract.low.u32 %v86
  %v88 = vextract.high.u32 %v86
  %v89 = vmul.u32 %v82, %v73
  %v90 = vadd.s32 %v85, %v87
  %vm91 = vc.u32 %v85, %v87
  %v92 = vadd.s32 %v88, 1
  %v93 = vsel %vm91, %v92, %v88
  %v94 = vadd.s32 %v89, %v93
  %v95 = vadd.s32 %v94, 536870912
  %v96 = vshrl.u32 %v95, 30
  %v97 = vshll.u32 %v96, 30
  %v98 = vsub.s32 %v94, %v97
  %vm99 = vcmp.lt.s32.totalorder %v98, 0
  %v100 = vsub.s32 0, %v98
  %v101 = vsel %vm99, %v100, %v98
  %v102 = vclz %v101
  %v103 = vsub.s32 %v102, 2
  %vm104 = vcmp.gt.s32.totalorder 0, %v103
  %v105 = vsel %vm104, 0, %v103
  %v106 = vsub.s32 32, %v105
  %v107 = vshll.u32 %v98, %v105
  %v108 = vshrl.u32 %v90, %v106
  %v109 = vor.u32 %v107, %v108
  %v110 = vsub.s32 4294967266, %v105
  %v111 = vadd.s32 %v110, 127
  %v112 = vshll.u32 %v111, 23
  %v113 = vor.u32 4788187, %v112
  %v114 = vand.u32 2147483647, %v113
  %v116 = vcvt.s32.f32 %v109
  %v117 = vmul.f32 %v116, %v114
  %v118 = vxor.u32 %v117, 2147483648
  %v119 = vsel %vm36, %v118, %v117
  %v120 = vsub.s32 4, %v96
  %v121 = vsel %vm36, %v120, %v96
  %v122 = vsel %vm35, %v33, %v119
  %v123 = vsel %vm35, 0, %v121
  %v124 = vcosq.f32.pop %v122
  %v125 = vsinq.f32.pop %v122
  %vm126 = vweird.f32 %v33
  %v127 = vand.u32 %v123, 3
  %vm128 = vcmp.lt.s32.totalorder %v127, 2
  %vm129 = vcmp.eq.s32.totalorder %v127, 0
  %v130 = vxor.u32 %v125, 2147483648
  %v131 = vsel %vm129, %v124, %v130
  %vm132 = vcmp.eq.s32.totalorder %v127, 2
  %v133 = vxor.u32 %v124, 2147483648
  %v134 = vsel %vm132, %v133, %v125
  %v135 = vsel %vm128, %v131, %v134
  %v136 = vsel %vm126, nan, %v135
  %v137 = vand.u32 2147483647, %v33
  %vm138 = vcmp.le.f32.partialorder %v137, 0.7853982
  %vm139 = vcmp.lt.s32.totalorder %v33, 0
  %v140 = vand.u32 %v33, 2139095040
  %v141 = vshrl.u32 %v140, 23
  %v142 = vsub.s32 %v141, 127
  %v143 = vand.u32 2147483647, %v33
  %v144 = vand.u32 %v143, 8388607
  %v145 = vor.u32 %v144, 8388608
  %v146 = vsub.s32 0, %v145
  %v147 = vadd.s32 %v142, 1
  %vm148 = vcmp.gt.s32.totalorder %v147, 0
  %v149 = vsel %vm148, %v147, 0
  %v150 = vshrl.u32 %v149, 5
  %v151 = vand.u32 %v149, 31
  %v152 = vsub.s32 32, %v151
  %v153 = vshrl.u32 683565275, %v152
  %v154 = vshll.u32 683565275, %v151
  %v155 = vshrl.u32 2475754826, %v152
  %v156 = vor.u32 %v154, %v155
  %v157 = vshll.u32 2475754826, %v151
  %v158 = vshrl.u32 2131351028, %v152
  %v159 = vor.u32 %v157, %v158
  %v160 = vshll.u32 2131351028, %v151
  %v161 = vshrl.u32 2102212464, %v152
  %v162 = vor.u32 %v160, %v161
  %v163 = vshll.u32 2102212464, %v151
  %v164 = vshrl.u32 920167782, %v152
  %v165 = vor.u32 %v163, %v164
  %v166 = vshll.u32 920167782, %v151
  %v167 = vshrl.u32 1326507024, %v152
  %v168 = vor.u32 %v166, %v167
  %vm169 = vcmp.lt.s32.totalorder %v150, 1
  %vm170 = vcmp.lt.s32.totalorder %v150, 2
  %vm171 = vcmp.lt.s32.totalorder %v150, 3
  %vm172 = vcmp.lt.s32.totalorder %v150, 4
  %v173 = vsel %vm169, %v153, %v156
  %v174 = vsel %vm172, %v162, 2102212464
  %v175 = vsel %vm171, %v159, %v174
  %v176 = vsel %vm170, %v173, %v175
  %v177 = vsel %vm169, %v156, %v159
  %v178 = vsel %vm172, %v165, 920167782
  %v179 = vsel %vm171, %v162, %v178
  %v180 = vsel %vm170, %v177, %v179
  %v181 = vsel %vm169, %v159, %v162
  %v182 = vsel %vm172, %v168, 1326507024
  %v183 = vsel %vm171, %v165, %v182
  %v184 = vsel %vm170, %v181, %v183
  %v185 = vshll.u32 %v145, 8
  %v186 = vmul.u32.u64.compose %v185, %v184
  %v187 = vextract.low.u32 %v186
  %v188 = vextract.high.u32 %v186
  %v189 = vmul.u32.u64.compose %v185, %v180
  %v190 = vextract.low.u32 %v189
  %v191 = vextract.high.u32 %v189
  %v192 = vmul.u32 %v185, %v176
  %v193 = vadd.s32 %v188, %v190
  %vm194 = vc.u32 %v188, %v190
  %v195 = vadd.s32 %v191, 1
  %v196 = vsel %vm194, %v195, %v191
  %v197 = vadd.s32 %v192, %v196
  %v198 = vadd.s32 %v197, 536870912
  %v199 = vshrl.u32 %v198, 30
  %v200 = vshll.u32 %v199, 30
  %v201 = vsub.s32 %v197, %v200
  %vm202 = vcmp.lt.s32.totalorder %v201, 0
  %v203 = vsub.s32 0, %v201
  %v204 = vsel %vm202, %v203, %v201
  %v205 = vclz %v204
  %v206 = vsub.s32 %v205, 2
  %vm207 = vcmp.gt.s32.totalorder 0, %v206
  %v208 = vsel %vm207, 0, %v206
  %v209 = vsub.s32 32, %v208
  %v210 = vshll.u32 %v201, %v208
  %v211 = vshrl.u32 %v193, %v209
  %v212 = vor.u32 %v210, %v211
  %v213 = vsub.s32 4294967266, %v208
  %v214 = vadd.s32 %v213, 127
  %v215 = vshll.u32 %v214, 23
  %v216 = vor.u32 4788187, %v215
  %v217 = vand.u32 2147483647, %v216
  %v219 = vcvt.s32.f32 %v212
  %v220 = vmul.f32 %v219, %v217
  %v221 = vxor.u32 %v220, 2147483648
  %v222 = vsel %vm139, %v221, %v220
  %v223 = vsub.s32 4, %v199
  %v224 = vsel %vm139, %v223, %v199
  %v225 = vsel %vm138, %v33, %v222
  %v226 = vsel %vm138, 0, %v224
  %v227 = vcosq.f32.pop %v225
  %v228 = vsinq.f32.pop %v225
  %vm229 = vweird.f32 %v33
  %v230 = vadd.s32 %v226, 3
  %v231 = vand.u32 %v230, 3
  %vm232 = vcmp.lt.s32.totalorder %v231, 2
  %vm233 = vcmp.eq.s32.totalorder %v231, 0
  %v234 = vxor.u32 %v228, 2147483648
  %v235 = vsel %vm233, %v227, %v234
  %vm236 = vcmp.eq.s32.totalorder %v231, 2
  %v237 = vxor.u32 %v227, 2147483648
  %v238 = vsel %vm236, %v237, %v228
  %v239 = vsel %vm232, %v235, %v238
  %v240 = vsel %vm229, nan, %v239
  %v241 = vmul.f32 %v26, 0.25
  %v242 = vmul.f32 %v241, %v26
  %v243 = vmul.f32 %v30, 0.25
  %v244 = vmul.f32 %v243, %v30
  %v245 = vadd.f32 %v242, %v244
  %v246 = vmul.f32 %v245, 0.5
  %v247 = vsub.f32 %v242, %v244
  %v248 = vmul.f32 %v247, 0.5
  %v249 = vmul.f32 %v248, %v136
  %v250 = vadd.f32 %v246, %v249
  %v251 = vsub.f32 %v246, %v249
  %v252 = vmul.f32 %v248, %v240
  %v253 = vmul.f32 %v15, %v17
  %v254 = vmul.f32 %v19, %v19
  %v255 = vsub.f32 %v253, %v254
  %v256 = vmul.f32 %v250, %v251
  %v257 = vmul.f32 %v252, %v252
  %v258 = vsub.f32 %v256, %v257
  %v259 = vadd.f32 %v15, %v250
  %v260 = vmul.f32 %v259, 0.5
  %v261 = vadd.f32 %v17, %v251
  %v262 = vmul.f32 %v261, 0.5
  %v263 = vadd.f32 %v19, %v252
  %v264 = vmul.f32 %v263, 0.5
  %v265 = vmul.f32 %v260, %v262
  %v266 = vmul.f32 %v264, %v264
  %v267 = vsub.f32 %v265, %v266
  %v268 = vsub.f32 %v11, %v20
  %v269 = vsub.f32 %v13, %v22
  %v270 = vmul.f32 %v260, %v269
  %v271 = vmul.f32 %v270, %v269
  %v272 = vmul.f32 %v262, %v268
  %v273 = vmul.f32 %v272, %v268
  %v274 = vadd.f32 %v271, %v273
  %v275 = vmul.f32 %v264, 2.0
  %v276 = vmul.f32 %v275, %v268
  %v277 = vmul.f32 %v276, %v269
  %v278 = vsub.f32 %v274, %v277
  %v279 = vmul.f32 %v278, 0.125
  %v280 = vrcp.pop %v267
  %v281 = vmul.f32 %v279, %v280
  %v282 = vlog2.pop %v267
  %v283 = vmul.f32 %v282, 0.6931472
  %v284 = vmul.f32 %v283, 0.5
  %v285 = vmul.f32 %v255, %v258
  %v286 = vadd.f32 %v285, 1e-07
  %v287 = vlog2.pop %v286
  %v288 = vmul.f32 %v287, 0.6931472
  %v289 = vmul.f32 %v288, 0.25
  %v290 = vsub.f32 %v284, %v289
  %v291 = vadd.f32 %v281, %v290
  %v292 = vsub.f32 0.0, %v291
  %v293 = vmul.f32 %v292, 1.442695
  %v294 = vpow.pop %v293
  %v295 = vmin.f32 %v294, 1.0
  %v296 = vsub.f32 1.0, %v295
  %v297 = vrsqrt.pop %v296
  %v298 = vmul.f32 %v296, %v297
  %vm299 = vcmp.eq.f32.partialorder %v296, inf
  %v300 = vsel %vm299, %v296, %v298
  %vm301 = vcmp.eq.f32.partialorder %v296, 0.0
  %v302 = vand.u32 %v296, 2147483648
  %v303 = vsel %vm301, %v302, %v300
  %304 = vst [vmem:[%s2] sm:$0xff] %v303
  // Predicated region
  $region10: #{_probiou_full_jit.1} parent=0 // pred_check
    _
  $region11: #{_probiou_full_jit.1} parent=0 // pred_check_branch
    %306 = sbr.rel (0) target = $region13
  $region12: #{_probiou_full_jit.1} parent=0 // pred_region
    _
  $region13: #{_probiou_full_jit.1} parent=0 // pred_fallthru
    _
  // Predicated region
  $region14: #{_probiou_full_jit.1} parent=0 // pred_check
    _
  $region15: #{_probiou_full_jit.1} parent=0 // pred_check_branch
    %308 = sbr.rel (0) target = $region17
  $region16: #{_probiou_full_jit.1} parent=0 // pred_region
    _
  $region17: #{_probiou_full_jit.1} parent=0 // pred_fallthru
    _

</llo_original>
